<compile_context>
chip_gen: v7x
topology: tpu7x:2x2x1
jax: 0.10.0
libtpu: 0.0.40
codegen_flags: <defaults>
</compile_context>

<pallas_src>
import math
import functools

import jax
import jax.numpy as jnp
from jax.experimental import pallas as pl
from jax.experimental.pallas import tpu as pltpu


# ---------------------------------------------------------------------------
# Kernels.  Grid = (C_pad // tc, B_pad // tb): class tiles outer, batch inner,
# so the W tile is resident across the inner loop.
# ---------------------------------------------------------------------------
def _cosface_infer_kernel(x_ref, w_ref, invw_ref, out_ref):
    # logits = (x @ W_col_tile) * (1 / ||W_row||)
    logits = jnp.dot(x_ref[...], w_ref[...], preferred_element_type=jnp.float32)
    out_ref[...] = (logits * invw_ref[...]).astype(out_ref.dtype)


def _cosface_train_kernel(x_ref, w_ref, invws_ref, y_ref, out_ref, *, ms, tc):
    j = pl.program_id(0)                                   # class-tile index (outer axis)
    logits = jnp.dot(x_ref[...], w_ref[...], preferred_element_type=jnp.float32)
    z = logits * invws_ref[...]                            # (tb, tc); s already folded in
    tb, tcc = z.shape
    col = jax.lax.broadcasted_iota(jnp.int32, (tb, tcc), 1)
    y_local = y_ref[...] - j * tc                          # (tb, 1); padded rows are < 0
    out_ref[...] = jnp.where(col == y_local, z - ms, z).astype(out_ref.dtype)


# ---------------------------------------------------------------------------
# Helpers: VMEM budget + tile selection.
# ---------------------------------------------------------------------------
def _round_up(x, n):
    return ((x + n - 1) // n) * n


def _vmem_capacity_bytes():
    try:
        return int(pltpu.get_tpu_info().vmem_capacity_bytes)
    except Exception:
        return 64 * 1024 * 1024        # conservative (v7x-sized) fallback


def _vmem_estimate(tb, tc, E, elt):
    # Double-buffered inputs + output, including Mosaic layout padding:
    #   (1, tc) inv_w block pads to 8 sublanes; (tb, 1) label block pads to 128 lanes.
    return (2 * tb * E * elt            # x tile
            + 2 * E * tc * elt          # W tile
            + 2 * 8 * tc * 4            # inv_w tile (sublane padded)
            + 2 * tb * 128 * 4          # label tile (lane padded)
            + 2 * tb * tc * 4)          # output tile


def _divisor_tiles(units, unit, cap):
    """Tile sizes d*unit (d | units) not exceeding cap, descending. Always >= 1 entry."""
    divs = [d for d in range(1, units + 1) if units % d == 0]
    tiles = sorted({d * unit for d in divs if d * unit <= cap}, reverse=True)
    return tiles if tiles else [unit]


def _select_tiles(B_pad, C_pad, E, elt, budget):
    # Generation-aware caps: small budget (v7x 64 MiB physical) -> smaller tiles.
    if budget <= 56 * 1024 * 1024:
        tb_cap, tc_cap = 256, 1024
    elif budget >= 88 * 1024 * 1024:
        tb_cap, tc_cap = 512, 4096
    else:
        tb_cap, tc_cap = 512, 2048

    tcs = _divisor_tiles(C_pad // 128, 128, tc_cap)
    tbs = _divisor_tiles(B_pad // 8, 8, tb_cap)

    # Prefer a large lane-dense class tile first (W is the resident / dominant operand),
    # then the largest batch tile that still fits the budget.
    for tc in tcs:
        for tb in tbs:
            if _vmem_estimate(tb, tc, E, elt) <= budget:
                return tb, tc
    return tbs[-1], tcs[-1]


# ---------------------------------------------------------------------------
# Module.
# ---------------------------------------------------------------------------
class CosFace:
    """JAX/Pallas re-implementation of the PyTorch CosFace head."""

    def __init__(self, num_features, num_classes, s=30.0, m=0.35, *, key):
        self.num_features = num_features
        self.n_classes = num_classes
        self.s = float(s)
        self.m = float(m)
        # nn.init.xavier_uniform_ on a (num_classes, num_features) tensor:
        # bound = sqrt(6 / (fan_in + fan_out)).
        bound = math.sqrt(6.0 / (num_features + num_classes))
        W = jax.random.uniform(key, (num_classes, num_features), jnp.float32, -bound, bound)
        self.set_weights(W)

    def set_weights(self, W):
        """Single parameter-update path: refreshes ALL cached derived copies."""
        W = jnp.asarray(W, jnp.float32)
        assert W.shape == (self.n_classes, self.num_features)
        self.W = W
        C, E = W.shape
        C_pad = _round_up(C, 128)
        self._C_pad = C_pad

        # 1 / ||W_row|| (eps as in F.normalize); padded class columns get 0 -> zero logits.
        eps = 1e-12
        inv = 1.0 / jnp.maximum(jnp.sqrt(jnp.sum(W * W, axis=1)), eps)        # (C,)
        inv_pad = jnp.zeros((1, C_pad), jnp.float32).at[0, :C].set(inv)
        self._inv_w = inv_pad                      # inference path (no scale)
        self._inv_w_s = inv_pad * self.s           # training path (s folded in)

        # (E, C_pad) "kernel" layout so the MXU consumes the weight directly.
        wk = jnp.zeros((E, C_pad), jnp.float32).at[:, :C].set(W.T)
        self._W_kernel_f32 = wk
        # NOTE: inv_w is computed from f32 W while the bf16 path multiplies bf16 W, so
        # cosines can exceed |1| by ~bf16 eps; acceptable for this head.
        self._W_kernel_bf16 = wk.astype(jnp.bfloat16)

    def __call__(self, x, y=None, *, tb=None, tc=None,
                 use_bf16_matmul=True, out_dtype=jnp.float32):
        B, E = x.shape
        assert E == self.num_features
        C, C_pad = self.n_classes, self._C_pad
        B_pad = _round_up(B, 8)

        elt = 2 if use_bf16_matmul else 4
        cap_bytes = _vmem_capacity_bytes()
        budget = int(0.70 * cap_bytes)

        tb_sel, tc_sel = _select_tiles(B_pad, C_pad, E, elt, budget)
        if tb is None:
            tb = tb_sel
        if tc is None:
            tc = tc_sel
        assert B_pad % tb == 0 and tb % 8 == 0
        assert C_pad % tc == 0 and tc % 128 == 0

        est = _vmem_estimate(tb, tc, E, elt)
        vmem_limit = int(min(0.9 * cap_bytes, max(1.25 * est, 16 * 1024 * 1024)))

        # Class tiles OUTER, batch tiles INNER -> W tile block index constant over the
        # inner loop (weight streamed from HBM exactly once).
        grid = (C_pad // tc, B_pad // tb)

        x_in = x.astype(jnp.bfloat16 if use_bf16_matmul else jnp.float32)
        if B_pad != B:
            x_in = jnp.pad(x_in, ((0, B_pad - B), (0, 0)))
        w_in = self._W_kernel_bf16 if use_bf16_matmul else self._W_kernel_f32

        compiler_params = pltpu.CompilerParams(
            dimension_semantics=("parallel", "parallel"),
            vmem_limit_bytes=vmem_limit)

        if y is None:
            out = pl.pallas_call(
                _cosface_infer_kernel,
                out_shape=jax.ShapeDtypeStruct((B_pad, C_pad), out_dtype),
                grid_spec=pltpu.PrefetchScalarGridSpec(
                    num_scalar_prefetch=0,
                    grid=grid,
                    in_specs=[
                        pl.BlockSpec((tb, E), lambda j, i: (i, 0)),   # x
                        pl.BlockSpec((E, tc), lambda j, i: (0, j)),   # W (kernel layout)
                        pl.BlockSpec((1, tc), lambda j, i: (0, j)),   # 1/||W_row||
                    ],
                    out_specs=pl.BlockSpec((tb, tc), lambda j, i: (i, j)),
                ),
                compiler_params=compiler_params,
            )(x_in, w_in, self._inv_w)
        else:
            # Padded batch rows get label -1 (never matches a non-negative column).
            y_arr = jnp.full((B_pad, 1), -1, jnp.int32).at[:B, 0].set(y.astype(jnp.int32))
            out = pl.pallas_call(
                functools.partial(_cosface_train_kernel,
                                  ms=float(self.m * self.s), tc=int(tc)),
                out_shape=jax.ShapeDtypeStruct((B_pad, C_pad), out_dtype),
                grid_spec=pltpu.PrefetchScalarGridSpec(
                    num_scalar_prefetch=0,
                    grid=grid,
                    in_specs=[
                        pl.BlockSpec((tb, E), lambda j, i: (i, 0)),   # x
                        pl.BlockSpec((E, tc), lambda j, i: (0, j)),   # W (kernel layout)
                        pl.BlockSpec((1, tc), lambda j, i: (0, j)),   # (1/||W_row||) * s
                        pl.BlockSpec((tb, 1), lambda j, i: (i, 0)),   # labels
                    ],
                    out_specs=pl.BlockSpec((tb, tc), lambda j, i: (i, j)),
                ),
                compiler_params=compiler_params,
            )(x_in, w_in, self._inv_w_s, y_arr)

        return out[:B, :C]


# ---------------------------------------------------------------------------
# Pure-JAX reference for verification.
# ---------------------------------------------------------------------------
def _reference(x, W, y, m, s):
    wn = W / jnp.maximum(jnp.linalg.norm(W, axis=1, keepdims=True), 1e-12)
    logits = x @ wn.T
    if y is None:
        return logits
    onehot = jax.nn.one_hot(y, W.shape[0], dtype=logits.dtype)
    return (logits - m * onehot) * s


if __name__ == "__main__":
    key = jax.random.PRNGKey(0)
    k_x, k_y, k_w = jax.random.split(key, 3)

    # Small test shapes; C=500 (not a multiple of 128) exercises the class-padding path.
    B, E, C = 8, 64, 500
    x = jax.random.normal(k_x, (B, E), jnp.float32)
    y = jax.random.randint(k_y, (B,), 0, C)

    head = CosFace(E, C, key=k_w)

    out_bf16 = head(x, y, tc=128)                    # default bf16 path, multi class tiles
    out_f32 = head(x, y, use_bf16_matmul=False)      # f32 path, auto tile selection
    logits = head(x, None)                           # inference path (no margin, no scale)
    jax.block_until_ready((out_bf16, out_f32, logits))

    ref_out = _reference(x, head.W, y, head.m, head.s)
    ref_logits = _reference(x, head.W, None, head.m, head.s)

    assert out_bf16.shape == (B, C) and out_f32.shape == (B, C) and logits.shape == (B, C)
    assert jnp.allclose(out_f32, ref_out, atol=5e-3, rtol=5e-3)
    assert jnp.allclose(out_bf16, ref_out, atol=0.75, rtol=2e-2)
    assert jnp.allclose(logits, ref_logits, atol=5e-2, rtol=5e-2)

    print("KERNEL_OK")
</pallas_src>

<mosaic_0001>
module attributes {stable_mosaic.version = 11 : i64} {
  func.func @_cosface_train_kernel(%arg0: i32, %arg1: i32, %arg2: memref<8x64xbf16, #tpu.memory_space<vmem>>, %arg3: memref<64x128xbf16, #tpu.memory_space<vmem>>, %arg4: memref<1x128xf32, #tpu.memory_space<vmem>>, %arg5: memref<8x1xi32, #tpu.memory_space<vmem>>, %arg6: memref<8x128xf32, #tpu.memory_space<vmem>>) attributes {dimension_semantics = [#tpu.dimension_semantics<parallel>, #tpu.dimension_semantics<parallel>], iteration_bounds = array<i64: 4, 1>, scalar_prefetch = 0 : i64, scratch_operands = 0 : i64, tpu.core_type = #tpu.core_type<tc>, window_params = [{transform_indices = @transform_0, window_bounds = array<i64: 8, 64>}, {transform_indices = @transform_1, window_bounds = array<i64: 64, 128>}, {transform_indices = @transform_2, window_bounds = array<i64: 1, 128>}, {transform_indices = @transform_3, window_bounds = array<i64: 8, 1>}, {transform_indices = @transform_4, window_bounds = array<i64: 8, 128>}]} {
    %c0 = arith.constant 0 : index
    %c0_0 = arith.constant 0 : index
    %0 = vector.load %arg2[%c0, %c0_0] : memref<8x64xbf16, #tpu.memory_space<vmem>>, vector<8x64xbf16>
    %c0_1 = arith.constant 0 : index
    %c0_2 = arith.constant 0 : index
    %1 = vector.load %arg3[%c0_1, %c0_2] : memref<64x128xbf16, #tpu.memory_space<vmem>>, vector<64x128xbf16>
    %cst = arith.constant dense<0.000000e+00> : vector<8x128xf32>
    %2 = tpu.matmul %0, %1, %cst {dimension_numbers = #tpu.dot_dimension_numbers<[1], [0], [0], [1], [0, 0, 1, 1], [], []>} : vector<8x64xbf16>, vector<64x128xbf16>, vector<8x128xf32> -> vector<8x128xf32>
    %c0_3 = arith.constant 0 : index
    %c0_4 = arith.constant 0 : index
    %3 = vector.load %arg4[%c0_3, %c0_4] : memref<1x128xf32, #tpu.memory_space<vmem>>, vector<1x128xf32>
    %4 = vector.broadcast %3 : vector<1x128xf32> to vector<8x128xf32>
    %5 = arith.mulf %2, %4 : vector<8x128xf32>
    %6 = tpu.iota {dimensions = array<i32: 1>} : vector<8x128xi32>
    %c0_5 = arith.constant 0 : index
    %c0_6 = arith.constant 0 : index
    %7 = vector.load %arg5[%c0_5, %c0_6] : memref<8x1xi32, #tpu.memory_space<vmem>>, vector<8x1xi32>
    %c128_i32 = arith.constant 128 : i32
    %8 = arith.muli %arg0, %c128_i32 : i32
    %9 = vector.broadcast %8 : i32 to vector<8x1xi32>
    %10 = arith.subi %7, %9 : vector<8x1xi32>
    %11 = vector.broadcast %10 : vector<8x1xi32> to vector<8x128xi32>
    %12 = arith.cmpi eq, %6, %11 : vector<8x128xi32>
    %cst_7 = arith.constant 1.050000e+01 : f32
    %13 = vector.broadcast %cst_7 : f32 to vector<8x128xf32>
    %14 = arith.subf %5, %13 : vector<8x128xf32>
    %15 = arith.select %12, %14, %5 : vector<8x128xi1>, vector<8x128xf32>
    %c0_8 = arith.constant 0 : index
    %c0_9 = arith.constant 0 : index
    %16 = vector.load %arg6[%c0_8, %c0_9] : memref<8x128xf32, #tpu.memory_space<vmem>>, vector<8x128xf32>
    tpu.vector_store %arg6[%c0_8, %c0_9], %15 {strides = array<i32>} : memref<8x128xf32, #tpu.memory_space<vmem>>, vector<8x128xf32>,
    return
  }
  func.func @transform_0(%arg0: i32, %arg1: i32) -> (i32, i32) {
    %c0_i32 = arith.constant 0 : i32
    %c0_i32_0 = arith.constant 0 : i32
    return %arg1, %c0_i32 : i32, i32
  }
  func.func @transform_1(%arg0: i32, %arg1: i32) -> (i32, i32) {
    %c0_i32 = arith.constant 0 : i32
    %c0_i32_0 = arith.constant 0 : i32
    return %c0_i32, %arg0 : i32, i32
  }
  func.func @transform_2(%arg0: i32, %arg1: i32) -> (i32, i32) {
    %c0_i32 = arith.constant 0 : i32
    %c0_i32_0 = arith.constant 0 : i32
    return %c0_i32, %arg0 : i32, i32
  }
  func.func @transform_3(%arg0: i32, %arg1: i32) -> (i32, i32) {
    %c0_i32 = arith.constant 0 : i32
    %c0_i32_0 = arith.constant 0 : i32
    return %arg1, %c0_i32 : i32, i32
  }
  func.func @transform_4(%arg0: i32, %arg1: i32) -> (i32, i32) {
    %c0_i32 = arith.constant 0 : i32
    return %arg1, %arg0 : i32, i32
  }
}

</mosaic_0001>

<llo_original>
// kernel: tpu_custom_call.1
$region0: #{tpu_custom_call.1}
  #allocation0 [shape = 'u32[]', space=smem, size = 0x4, offset = 0x4, fixed_abs, tag = 'smem constant byte address 0x4 - core index']
  #allocation1 [shape = 'u32[144,128]{1,0:T(1,128)}', space=vmem, size = 0x12000, scoped, tag = 'internal scratch']
  %s0 = inlined_call_operand.vmem [shape: bf16[8,64], index: 0, kind: input, shape index: {}]
  %s1 = inlined_call_operand.hbm [shape: bf16[64,512], index: 1, kind: input, shape index: {}]
  %s2 = inlined_call_operand.vmem [shape: f32[1,512], index: 2, kind: input, shape index: {}]
  %s3 = inlined_call_operand.vmem [shape: s32[8,1], index: 3, kind: input, shape index: {}]
  %s4 = inlined_call_operand.hbm [shape: f32[8,512], index: 4, kind: output, shape index: {}]
  %s5 = sld [smem:[#allocation0]]
  $region53: #{tpu_custom_call.1} parent=0
    _
  %s7 = ssub.s32 1, %s5
  %s8 = scalar_select 0, %s7, %s5
  $region1: #{tpu_custom_call.1} parent=0
    #allocation2 [shape = 'u8[32768]{0}', space=vmem, size = 0x8000, scoped, tag = 'input window, operand 1']
    #allocation3 [shape = 's32[2]{0}', space=sflag, size = 0x8, scoped, tag = 'scoped memory for tpu_custom_call.1']
    #allocation4 [shape = 's32[2]{0}', space=sflag, size = 0x8, scoped, tag = 'scoped memory for tpu_custom_call.1']
    #allocation5 [shape = 'u8[8192]{0}', space=vmem, size = 0x2000, scoped, tag = 'output window, operand 0']
    %9 = vsyncpa [#allocation3], 0
    %s10 = scalar_lea.sflag [#allocation3], 1
    %11 = vsyncpa %s10, 0
    %12 = vsyncpa [#allocation4], 0
    %s13 = scalar_lea.sflag [#allocation4], 1
    %14 = vsyncpa %s13, 0
    loop: start=0, step=1, limit=6
    $region2: #{tpu_custom_call.1} parent=1 // loop_pre_header
      _
    $region3: #{tpu_custom_call.1} parent=1 // loop_header
      %s16 = sphi 0, %s20
      %p17 = scmp.ge.s32.totalorder %s16, 6
      %s23 = sphi 0, %s35
      %s24 = sphi 0, %s31
      %s25 = sphi 0, %s23
      %s26 = sphi 0, %s24
      %s27 = sphi 0, %s25
      %s28 = sphi 0, %s26
      %s38 = sphi 0, %s40
      %s41 = sphi 0, %s38
      %s42 = sphi 0, %s41
      %s58 = sphi 0, %s42
      %s64 = sphi 0, %s66
      %s67 = sphi 0, %s64
      %s68 = sphi 0, %s67
      %s84 = sphi 0, %s68
      %s90 = sphi 0, %s92
      %s93 = sphi 0, %s90
      %s94 = sphi 0, %s93
      %s110 = sphi 0, %s94
      %s116 = sphi 0, %s118
      %s119 = sphi 0, %s116
      %s120 = sphi 0, %s119
      %s136 = sphi 0, %s120
      %s144 = sphi 0, %s146
      %s147 = sphi 0, %s144
      %s148 = sphi 0, %s147
      %s164 = sphi 0, %s148
    $region4: #{tpu_custom_call.1} parent=1 // loop_header_branch
      %19 = sbr.rel (%p17) target = $region8
    $region5: #{tpu_custom_call.1} parent=1 // loop_body
      %s21 = ssub.s32 %s16, 1
      %s22 = ssub.s32 %s16, 2
      %s29 = sadd.s32 1, %s24
      %p30 = scmp.ge.s32.totalorder %s29, 1
      %s31 = scalar_select %p30, 0, %s29
      %s32 = sadd.s32 1, %s23
      %s33 = scalar_select %p30, %s32, %s23
      %p34 = scmp.ge.s32.totalorder %s33, 4
      %s35 = scalar_select %p34, 0, %s33
      %s36 = ssub.s32 %s24, %s31
      %p37 = scmp.eq.s32.totalorder %s36, 0
      %s39 = sadd.s32 %s38, 1
      %s40 = scalar_select %p37, %s38, %s39
      %p43 = pneg %p37
      %p44 = scmp.eq.s32.totalorder %s16, 3
      %p45 = por %p43, %p44
      %p46 = scmp.ne.s32.totalorder %s38, %s41
      %p47 = scmp.eq.s32.totalorder %s16, 0
      %p48 = por %p46, %p47
      %p49 = scmp.ne.s32.totalorder %s38, %s41
      %p50 = scmp.eq.s32.totalorder %s21, 3
      %p51 = por %p49, %p50
      %p52 = scmp.ne.s32.totalorder %s41, %s42
      %p53 = scmp.eq.s32.totalorder %s21, 0
      %p54 = por %p52, %p53
      %p55 = scmp.ne.s32.totalorder %s41, %s42
      %p56 = scmp.eq.s32.totalorder %s22, 3
      %p57 = por %p55, %p56
      %p59 = scmp.ne.s32.totalorder %s42, %s58
      %p60 = scmp.eq.s32.totalorder %s22, 0
      %p61 = por %p59, %p60
      %s62 = ssub.s32 %s23, %s35
      %p63 = scmp.eq.s32.totalorder %s62, 0
      %s65 = sadd.s32 %s64, 1
      %s66 = scalar_select %p63, %s64, %s65
      %p69 = pneg %p63
      %p70 = scmp.eq.s32.totalorder %s16, 3
      %p71 = por %p69, %p70
      %p72 = scmp.ne.s32.totalorder %s64, %s67
      %p73 = scmp.eq.s32.totalorder %s16, 0
      %p74 = por %p72, %p73
      %p75 = scmp.ne.s32.totalorder %s64, %s67
      %p76 = scmp.eq.s32.totalorder %s21, 3
      %p77 = por %p75, %p76
      %p78 = scmp.ne.s32.totalorder %s67, %s68
      %p79 = scmp.eq.s32.totalorder %s21, 0
      %p80 = por %p78, %p79
      %p81 = scmp.ne.s32.totalorder %s67, %s68
      %p82 = scmp.eq.s32.totalorder %s22, 3
      %p83 = por %p81, %p82
      %p85 = scmp.ne.s32.totalorder %s68, %s84
      %p86 = scmp.eq.s32.totalorder %s22, 0
      %p87 = por %p85, %p86
      %s88 = ssub.s32 %s23, %s35
      %p89 = scmp.eq.s32.totalorder %s88, 0
      %s91 = sadd.s32 %s90, 1
      %s92 = scalar_select %p89, %s90, %s91
      %p95 = pneg %p89
      %p96 = scmp.eq.s32.totalorder %s16, 3
      %p97 = por %p95, %p96
      %p98 = scmp.ne.s32.totalorder %s90, %s93
      %p99 = scmp.eq.s32.totalorder %s16, 0
      %p100 = por %p98, %p99
      %p101 = scmp.ne.s32.totalorder %s90, %s93
      %p102 = scmp.eq.s32.totalorder %s21, 3
      %p103 = por %p101, %p102
      %p104 = scmp.ne.s32.totalorder %s93, %s94
      %p105 = scmp.eq.s32.totalorder %s21, 0
      %p106 = por %p104, %p105
      %p107 = scmp.ne.s32.totalorder %s93, %s94
      %p108 = scmp.eq.s32.totalorder %s22, 3
      %p109 = por %p107, %p108
      %p111 = scmp.ne.s32.totalorder %s94, %s110
      %p112 = scmp.eq.s32.totalorder %s22, 0
      %p113 = por %p111, %p112
      %s114 = ssub.s32 %s24, %s31
      %p115 = scmp.eq.s32.totalorder %s114, 0
      %s117 = sadd.s32 %s116, 1
      %s118 = scalar_select %p115, %s116, %s117
      %p121 = pneg %p115
      %p122 = scmp.eq.s32.totalorder %s16, 3
      %p123 = por %p121, %p122
      %p124 = scmp.ne.s32.totalorder %s116, %s119
      %p125 = scmp.eq.s32.totalorder %s16, 0
      %p126 = por %p124, %p125
      %p127 = scmp.ne.s32.totalorder %s116, %s119
      %p128 = scmp.eq.s32.totalorder %s21, 3
      %p129 = por %p127, %p128
      %p130 = scmp.ne.s32.totalorder %s119, %s120
      %p131 = scmp.eq.s32.totalorder %s21, 0
      %p132 = por %p130, %p131
      %p133 = scmp.ne.s32.totalorder %s119, %s120
      %p134 = scmp.eq.s32.totalorder %s22, 3
      %p135 = por %p133, %p134
      %p137 = scmp.ne.s32.totalorder %s120, %s136
      %p138 = scmp.eq.s32.totalorder %s22, 0
      %p139 = por %p137, %p138
      %s140 = ssub.s32 %s24, %s31
      %s141 = ssub.s32 %s23, %s35
      %s142 = sor.u32 %s140, %s141
      %p143 = scmp.eq.s32.totalorder %s142, 0
      %s145 = sadd.s32 %s144, 1
      %s146 = scalar_select %p143, %s144, %s145
      %p149 = pneg %p143
      %p150 = scmp.eq.s32.totalorder %s16, 3
      %p151 = por %p149, %p150
      %p152 = scmp.ne.s32.totalorder %s144, %s147
      %p153 = scmp.eq.s32.totalorder %s16, 0
      %p154 = por %p152, %p153
      %p155 = scmp.ne.s32.totalorder %s144, %s147
      %p156 = scmp.eq.s32.totalorder %s21, 3
      %p157 = por %p155, %p156
      %p158 = scmp.ne.s32.totalorder %s147, %s148
      %p159 = scmp.eq.s32.totalorder %s21, 0
      %p160 = por %p158, %p159
      %p161 = scmp.ne.s32.totalorder %s147, %s148
      %p162 = scmp.eq.s32.totalorder %s22, 3
      %p163 = por %p161, %p162
      %p165 = scmp.ne.s32.totalorder %s148, %s164
      %p166 = scmp.eq.s32.totalorder %s22, 0
      %p167 = por %p165, %p166
      %p168 = scmp.le.s32.totalorder 1, %s16
      %p169 = scmp.lt.s32.totalorder %s16, 5
      %p170 = pnand %p168, %p169
      %p171 = pneg %p170
      // Predicated region
      $region9: #{tpu_custom_call.1} parent=5 // pred_check
        _
      $region10: #{tpu_custom_call.1} parent=5 // pred_check_branch
        %173 = sbr.rel (%p170) target = $region12
      $region11: #{tpu_custom_call.1} parent=5 // pred_region
        %s174 = ssub.s32 %s16, 1
        // Predicated region
        $region13: #{tpu_custom_call.1} parent=11 // pred_check
          %p175 = pneg %p54
        $region14: #{tpu_custom_call.1} parent=11 // pred_check_branch
          %177 = sbr.rel (%p175) target = $region16
        $region15: #{tpu_custom_call.1} parent=11 // pred_region
          %p178 = scmp.lt.s32.totalorder %s26, 0
          %s179 = scalar_select %p178, %s26, 0
          %s180 = smul.addr %s179, 4
          %s181 = scalar_lea.vmem %s0, %s180
        $region16: #{tpu_custom_call.1} parent=11 // pred_fallthru
          _
        // Predicated region
        $region17: #{tpu_custom_call.1} parent=11 // pred_check
          %p182 = pneg %p132
        $region18: #{tpu_custom_call.1} parent=11 // pred_check_branch
          %184 = sbr.rel (%p182) target = $region20
        $region19: #{tpu_custom_call.1} parent=11 // pred_region
          %p185 = scmp.lt.s32.totalorder %s26, 0
          %s186 = scalar_select %p185, %s26, 0
          %s187 = smul.addr %s186, 8
          %s188 = scalar_lea.vmem %s3, %s187
        $region20: #{tpu_custom_call.1} parent=11 // pred_fallthru
          _
      $region12: #{tpu_custom_call.1} parent=5 // pred_fallthru
        _
      %p189 = scmp.lt.s32.totalorder %s16, 4
      // Predicated region
      $region21: #{tpu_custom_call.1} parent=5 // pred_check
        %p190 = pneg %p189
      $region22: #{tpu_custom_call.1} parent=5 // pred_check_branch
        %192 = sbr.rel (%p190) target = $region24
      $region23: #{tpu_custom_call.1} parent=5 // pred_region
        // Predicated region
        $region25: #{tpu_custom_call.1} parent=23 // pred_check
          %p193 = pneg %p74
        $region26: #{tpu_custom_call.1} parent=23 // pred_check_branch
          %195 = sbr.rel (%p193) target = $region28
        $region27: #{tpu_custom_call.1} parent=23 // pred_region
          %s196 = sand.u32 %s64, 1
          %s197 = scalar_lea.sflag [#allocation3], %s196
          %s198 = sand.u32 %s64, 1
          %s199 = smul.addr %s198, 32
          %s200 = scalar_lea.vmem [#allocation2], %s199
          %s202 = ssub.s32 512, 512
          %203 = vsyncadd %s197, %s202
          %s204 = smul.addr %s23, 64
          %s205 = scalar_lea.hbm %s1, %s204
          %s206 = sshll.u32 %s200, 4
          %s207 = int_to_ptr.vmem [resolvable:$true] %s206
          %212 = dma.hbm_to_vmem [thread:$0]  %s205, 512, %s207, %s197, 256, 64, 4
        $region28: #{tpu_custom_call.1} parent=23 // pred_fallthru
          _
        // Predicated region
        $region29: #{tpu_custom_call.1} parent=23 // pred_check
          %p213 = pneg %p100
        $region30: #{tpu_custom_call.1} parent=23 // pred_check_branch
          %215 = sbr.rel (%p213) target = $region32
        $region31: #{tpu_custom_call.1} parent=23 // pred_region
          %p216 = scmp.lt.s32.totalorder %s23, 3
          %s217 = scalar_select %p216, %s23, 3
          %s218 = scalar_lea.vmem %s2, %s217
        $region32: #{tpu_custom_call.1} parent=23 // pred_fallthru
          _
      $region24: #{tpu_custom_call.1} parent=5 // pred_fallthru
        _
      %p219 = scmp.le.s32.totalorder 1, %s16
      %p220 = scmp.lt.s32.totalorder %s16, 5
      %p221 = pnand %p219, %p220
      %p222 = pneg %p221
      // Predicated region
      $region33: #{tpu_custom_call.1} parent=5 // pred_check
        _
      $region34: #{tpu_custom_call.1} parent=5 // pred_check_branch
        %224 = sbr.rel (%p221) target = $region36
      $region35: #{tpu_custom_call.1} parent=5 // pred_region
        %s225 = ssub.s32 %s16, 1
        %s226 = sand.u32 %s67, 1
        %s227 = scalar_lea.sflag [#allocation3], %s226
        %s228 = sand.u32 %s67, 1
        %s229 = smul.addr %s228, 32
        %s230 = scalar_lea.vmem [#allocation2], %s229
        // Predicated region
        $region37: #{tpu_custom_call.1} parent=35 // pred_check
          %p231 = pneg %p80
        $region38: #{tpu_custom_call.1} parent=35 // pred_check_branch
          %233 = sbr.rel (%p231) target = $region40
        $region39: #{tpu_custom_call.1} parent=35 // pred_region
          %234 = dma.done %s227, 512
        $region40: #{tpu_custom_call.1} parent=35 // pred_fallthru
          _
        %p235 = scmp.lt.s32.totalorder %s26, 0
        %s236 = scalar_select %p235, %s26, 0
        %s237 = smul.addr %s236, 4
        %s238 = scalar_lea.vmem %s0, %s237
        %p239 = pneg %p54
        %p240 = pneg %p51
        %s241 = sand.u32 %s67, 1
        %s242 = scalar_lea.sflag [#allocation3], %s241
        %s243 = sand.u32 %s67, 1
        %s244 = smul.addr %s243, 32
        %s245 = scalar_lea.vmem [#allocation2], %s244
        %p246 = pneg %p80
        %p247 = pneg %p77
        %p248 = scmp.lt.s32.totalorder %s25, 3
        %s249 = scalar_select %p248, %s25, 3
        %s250 = scalar_lea.vmem %s2, %s249
        %p251 = pneg %p106
        %p252 = pneg %p103
        %p253 = scmp.lt.s32.totalorder %s26, 0
        %s254 = scalar_select %p253, %s26, 0
        %s255 = smul.addr %s254, 8
        %s256 = scalar_lea.vmem %s3, %s255
        %p257 = pneg %p132
        %p258 = pneg %p129
        %p259 = pneg %p160
        %p260 = pneg %p157
        %s261 = sand.u32 %s147, 1
        %s262 = scalar_lea.sflag [#allocation4], %s261
        %s263 = sand.u32 %s147, 1
        %s264 = smul.addr %s263, 8
        %s265 = scalar_lea.vmem [#allocation5], %s264
        %p266 = scmp.lt.s32.totalorder %s26, 0
        %s267 = scalar_select %p266, %s26, 0
        %s268 = smul.addr %s267, 4
        %s269 = scalar_lea.vmem %s0, %s268
        %p270 = scmp.lt.s32.totalorder %s25, 3
        %s271 = scalar_select %p270, %s25, 3
        %s272 = scalar_lea.vmem %s2, %s271
        %p273 = scmp.lt.s32.totalorder %s26, 0
        %s274 = scalar_select %p273, %s26, 0
        %s275 = smul.addr %s274, 8
        %s276 = scalar_lea.vmem %s3, %s275
        %v278 = vld [vmem:[%s269] sm:$0xf]
        %v279 = vld [vmem:[%s230] sm:$0xf]
        %v280 = vld [vmem:[%s230 + $0x4] sm:$0xf]
        %v281 = vld [vmem:[%s230 + $0x8] sm:$0xf]
        %v282 = vld [vmem:[%s230 + $0xc] sm:$0xf]
        %v283 = vld [vmem:[%s230 + $0x10] sm:$0xf]
        %v284 = vld [vmem:[%s230 + $0x14] sm:$0xf]
        %v285 = vld [vmem:[%s230 + $0x18] sm:$0xf]
        %v286 = vld [vmem:[%s230 + $0x1c] sm:$0xf]
        %v295 = vunpack.c.l.b16 %v279
        %v296 = vunpack.c.l.b16 %v280
        %v297 = vunpack.c.l.b16 %v281
        %v298 = vunpack.c.l.b16 %v282
        %v299 = vunpack.c.l.b16 %v283
        %v300 = vunpack.c.l.b16 %v284
        %v301 = vunpack.c.l.b16 %v285
        %v302 = vunpack.c.l.b16 %v286
        %v303 = vpack.c.b16 %v296, %v295
        %v304 = vpack.c.b16 %v298, %v297
        %v305 = vpack.c.b16 %v300, %v299
        %v306 = vpack.c.b16 %v302, %v301
        %vm311 = vcmask 523264
        %v313 = vsel %vm311, %v278, 0
        %315 = vmatprep.subr.bf16.mxu0 0
        %316 = vmatpush1.bf16.msra.mxu0 %v303
        %317 = vmatprep.subr.bf16.mxu0 0
        %318 = vmatpush1.bf16.msra.mxu0 %v304
        %319 = vmatprep.subr.bf16.mxu0 0
        %320 = vmatpush1.bf16.msra.mxu0 %v305
        %321 = vmatprep.subr.bf16.mxu0 0
        %322 = vmatpush1.bf16.msra.mxu0 %v306
        %323 = vmatprep.subr.bf16.mxu0 0
        %324 = vmatpush1.bf16.msra.mxu0 0
        %325 = vmatprep.subr.bf16.mxu0 0
        %326 = vmatpush1.bf16.msra.mxu0 0
        %327 = vmatprep.subr.bf16.mxu0 0
        %328 = vmatpush1.bf16.msra.mxu0 0
        %329 = vmatprep.subr.bf16.mxu0 0
        %330 = vmatpush1.bf16.msra.mxu0 0
        %331 = vmatprep.subr.bf16.mxu0 0
        %332 = vmatpush1.bf16.msra.mxu0 0
        %333 = vmatprep.subr.bf16.mxu0 0
        %334 = vmatpush1.bf16.msra.mxu0 0
        %335 = vmatprep.subr.bf16.mxu0 0
        %336 = vmatpush1.bf16.msra.mxu0 0
        %337 = vmatprep.subr.bf16.mxu0 0
        %338 = vmatpush1.bf16.msra.mxu0 0
        %339 = vmatprep.subr.bf16.mxu0 0
        %340 = vmatpush1.bf16.msra.mxu0 0
        %341 = vmatprep.subr.bf16.mxu0 0
        %342 = vmatpush1.bf16.msra.mxu0 0
        %343 = vmatprep.subr.bf16.mxu0 0
        %344 = vmatpush1.bf16.msra.mxu0 0
        %345 = vmatprep.subr.bf16.mxu0 0
        %346 = vmatpush1.bf16.msra.mxu0 0
        %347 = vmatprep.mubr.bf16.mxu0 0
        %348 = vmatmul.mubr.bf16.gmra.mrb[0].mxu0 %v313
        %v349 = vpop.f32.mrb[0].mxu0
        %v350 = vadd.f32 0.0, %v349
        %v351 = vpop.f32.mrb[0].mxu0
        %v352 = vpop.f32.mrb[0].mxu0
        %v353 = vpop.f32.mrb[0].mxu0
        %354 = vdwg.mxu0
        %v355 = vld [vmem:[%s272] sm:$0x1]
        %v357 = vlaneseq
        %v358 = vshrl.u32 %v357, 7
        %v359 = vsub.s32 0, %v358
        %v360 = vrot.slane %v355, %v359
        %v362 = vmul.f32 %v350, %v360
        %v363 = vlaneseq
        %v364 = vand.u32 %v363, 127
        %v365 = vld [vmem:[%s276] sm:$0xff]
        %s366 = smul.u32 %s25, 128
        %v367 = vstv %s366
        %v368 = vsub.s32 %v365, %v367
        %369 = vset.pattern.permute.xlu0 0
        %370 = vperm.xlu0 %369, %v368
        %v371 = vpop.permute.xlu0 %370
        %vm372 = vcmp.eq.s32.totalorder %v364, %v371
        %v373 = vsub.f32 %v362, 10.5
        %v374 = vsel %vm372, %v373, %v362
        %375 = vst [vmem:[%s265] sm:$0xff] %v374
        %s376 = sand.u32 %s147, 1
        %s377 = scalar_lea.sflag [#allocation4], %s376
        %s378 = sand.u32 %s147, 1
        %s379 = smul.addr %s378, 8
        %s380 = scalar_lea.vmem [#allocation5], %s379
        // Predicated region
        $region41: #{tpu_custom_call.1} parent=35 // pred_check
          %p381 = pneg %p157
        $region42: #{tpu_custom_call.1} parent=35 // pred_check_branch
          %383 = sbr.rel (%p381) target = $region44
        $region43: #{tpu_custom_call.1} parent=35 // pred_region
          %s385 = ssub.s32 128, 128
          %386 = vsyncadd %s377, %s385
          %s387 = smul.addr %s26, 4
          %s388 = sadd.s32 %s25, %s387
          %s389 = smul.addr %s388, 128
          %s390 = scalar_lea.hbm %s4, %s389
          %s392 = sshll.u32 %s380, 4
          %s393 = int_to_ptr.vmem [resolvable:$true] %s392
          %395 = dma.vmem_to_hbm [thread:$0]  %s393, 128, %s390, %s377
        $region44: #{tpu_custom_call.1} parent=35 // pred_fallthru
          _
      $region36: #{tpu_custom_call.1} parent=5 // pred_fallthru
        _
      %p396 = scmp.le.s32.totalorder 2, %s16
      // Predicated region
      $region45: #{tpu_custom_call.1} parent=5 // pred_check
        %p397 = pneg %p396
      $region46: #{tpu_custom_call.1} parent=5 // pred_check_branch
        %399 = sbr.rel (%p397) target = $region48
      $region47: #{tpu_custom_call.1} parent=5 // pred_region
        %s400 = ssub.s32 %s16, 2
        // Predicated region
        $region49: #{tpu_custom_call.1} parent=47 // pred_check
          %p401 = pneg %p163
        $region50: #{tpu_custom_call.1} parent=47 // pred_check_branch
          %403 = sbr.rel (%p401) target = $region52
        $region51: #{tpu_custom_call.1} parent=47 // pred_region
          %s404 = sand.u32 %s148, 1
          %s405 = scalar_lea.sflag [#allocation4], %s404
          %s406 = sand.u32 %s148, 1
          %s407 = smul.addr %s406, 8
          %s408 = scalar_lea.vmem [#allocation5], %s407
          %409 = dma.done %s405, 128
        $region52: #{tpu_custom_call.1} parent=47 // pred_fallthru
          _
      $region48: #{tpu_custom_call.1} parent=5 // pred_fallthru
        _
    $region6: #{tpu_custom_call.1} parent=1 // loop_footer
      %s20 = sadd.s32 1, %s16
    $region7: #{tpu_custom_call.1} parent=1 // loop_footer_branch
      %15 = sbr.rel target = $region3
    $region8: #{tpu_custom_call.1} parent=1 // loop_exit
      _
    %410 = vsyncpa [#allocation3], 1
    %s411 = scalar_lea.sflag [#allocation3], 1
    %412 = vsyncpa %s411, 1
    %413 = vsyncpa [#allocation4], 1
    %s414 = scalar_lea.sflag [#allocation4], 1
    %415 = vsyncpa %s414, 1

</llo_original>
